<compile_context>
chip_gen: v7x
topology: tpu7x:2x2x1
jax: 0.10.0
libtpu: 0.0.40
codegen_flags: <defaults>
</compile_context>

<pallas_src>
import jax
import jax.numpy as jnp
from jax.experimental import pallas as pl
from jax.experimental.pallas import tpu as pltpu


def _round_up(v, m):
    return (v + m - 1) // m * m


def _vmem_capacity_bytes():
    """Physical per-core VMEM (v7x: 64 MiB, v5e/v6e: 128 MiB); conservative fallback."""
    try:
        info = pltpu.get_tpu_info()
        cap = getattr(info, "vmem_capacity_bytes", None)
        if cap:
            return int(cap)
    except Exception:
        pass
    return 64 << 20


def _vmem_bytes(tm, th, d_in, d_out, n_h, out_itemsize):
    """Estimated kernel VMEM footprint (includes BOTH f32 and bf16 copies of h)."""
    wbuf = 1 if n_h == 1 else 2            # constant-index weights -> single buffer
    return (2 * tm * d_in * 4              # x tile (f32, double-buffered)
            + wbuf * (d_in * th * 2 + th * 4)   # W1^T tile (bf16) + b1 tile (f32)
            + wbuf * th * d_out * 2        # W2^T tile (bf16)
            + d_out * 4                    # b2 (single-buffered, constant index)
            + 2 * tm * d_out * out_itemsize  # output tile (double-buffered)
            + tm * d_out * 4               # f32 accumulator scratch
            + tm * th * (4 + 2))           # hidden intermediate: f32 + bf16 copy


def _pick_th(d_h, max_th):
    """Largest multiple of 128 that divides d_h and is <= max_th."""
    th = max(128, min(d_h, (max_th // 128) * 128))
    while d_h % th:
        th -= 128
    return th


def _choose_tiles(batch, d_in, d_h, d_out, vmem_cap, block_m, out_itemsize):
    if block_m is None:
        # Generation-aware default: bigger M tiles on 128-MiB parts (v5e/v6e),
        # 256 on 64-MiB v7x.  (v5e is MXU-bound already at modest tiles.)
        block_m = 512 if vmem_cap >= (100 << 20) else 256
    tm = max(8, min(block_m, _round_up(batch, 8)))
    th = _pick_th(d_h, d_h)
    budget_cap = int(0.55 * vmem_cap)
    while _vmem_bytes(tm, th, d_in, d_out, d_h // th, out_itemsize) > budget_cap:
        if th > 128:
            th = _pick_th(d_h, th - 128)
        elif tm > 8:
            tm = max(8, _round_up(tm // 2, 8))
        else:
            # TODO(synk): also tile the contraction (input_dim) axis for very
            # large input_dim; the current plan keeps a full K row resident.
            break
    return tm, th


def mlp_kernel(x_ref, w1_ref, b1_ref, w2_ref, b2_ref, o_ref, acc_ref):
    j = pl.program_id(1)                      # hidden-tile index (last, "arbitrary")

    @pl.when(j == 0)
    def _():
        acc_ref[...] = jnp.zeros_like(acc_ref)

    # fc1 tile: (TM, Din) @ (Din, TH) on the MXU, f32 accumulation.
    x = x_ref[...].astype(w1_ref.dtype)       # bf16 cast in-kernel (VPU)
    h = jnp.dot(x, w1_ref[...], preferred_element_type=jnp.float32)
    h = jnp.maximum(h + b1_ref[...], 0.0)     # bias + ReLU in f32 (per hidden chunk)
    # fc2 partial: (TM, TH) @ (TH, Dout), accumulated across hidden tiles.
    acc_ref[...] += jnp.dot(h.astype(w2_ref.dtype), w2_ref[...],
                            preferred_element_type=jnp.float32)

    @pl.when(j == pl.num_programs(1) - 1)
    def _():
        o_ref[...] = (acc_ref[...] + b2_ref[...]).astype(o_ref.dtype)


def prepare_params(w1, b1, w2, b2, *, compute_dtype=jnp.bfloat16):
    """One-time weight prep: transpose to (in, out), zero-pad hidden/output
    feature dims to multiples of 128, cast weights to the MXU compute dtype.

    PyTorch layouts: w1 (hidden, in), b1 (hidden,), w2 (out, hidden), b2 (out,).
    Zero padding is exact: padded hidden columns go through ReLU as 0 and hit
    zero W2 rows; padded output columns are sliced off after the kernel.
    """
    hidden_dim, input_dim = w1.shape
    output_dim = w2.shape[0]
    d_h = _round_up(hidden_dim, 128)
    d_out = _round_up(output_dim, 128)

    w1t = jnp.zeros((input_dim, d_h), compute_dtype)
    w1t = w1t.at[:, :hidden_dim].set(w1.T.astype(compute_dtype))
    b1p = jnp.zeros((1, d_h), jnp.float32).at[0, :hidden_dim].set(
        b1.astype(jnp.float32))
    w2t = jnp.zeros((d_h, d_out), compute_dtype)
    w2t = w2t.at[:hidden_dim, :output_dim].set(w2.T.astype(compute_dtype))
    b2p = jnp.zeros((1, d_out), jnp.float32).at[0, :output_dim].set(
        b2.astype(jnp.float32))
    # TODO(synk): optional fp8 (e4m3) weight storage on v7x halves weight
    # VMEM/HBM traffic; not available on v5e/v6e.
    return dict(w1t=w1t, b1=b1p, w2t=w2t, b2=b2p,
                input_dim=input_dim, output_dim=output_dim)


def mlp_forward_prepared(x, params, *, block_m=None, out_dtype=None):
    """Fused fc1 -> ReLU -> fc2 using pre-processed weights from prepare_params."""
    w1t, b1p, w2t, b2p = params["w1t"], params["b1"], params["w2t"], params["b2"]
    output_dim = params["output_dim"]
    batch, input_dim = x.shape
    assert input_dim == w1t.shape[0], "x feature dim must match prepared W1"
    d_h, d_out = w1t.shape[1], w2t.shape[1]
    out_dtype = x.dtype if out_dtype is None else out_dtype
    out_itemsize = jnp.dtype(out_dtype).itemsize

    vmem_cap = _vmem_capacity_bytes()
    tm, th = _choose_tiles(batch, input_dim, d_h, d_out, vmem_cap, block_m,
                           out_itemsize)
    n_h = d_h // th
    grid = (pl.cdiv(batch, tm), n_h)

    budget = _vmem_bytes(tm, th, input_dim, d_out, n_h, out_itemsize)
    hard_cap = max(vmem_cap - (8 << 20), 16 << 20)   # never request > physical VMEM
    vmem_limit = int(min(max(2 * budget, 32 << 20), hard_cap))

    cost = pl.CostEstimate(
        flops=2 * batch * (input_dim * d_h + d_h * d_out),
        transcendentals=0,
        bytes_accessed=int(x.size * x.dtype.itemsize
                           + w1t.size * w1t.dtype.itemsize
                           + w2t.size * w2t.dtype.itemsize
                           + b1p.size * 4 + b2p.size * 4
                           + batch * d_out * out_itemsize))

    def run(use_buffered):
        resident = dict(pipeline_mode=pl.Buffered(1)) if use_buffered else {}
        # W1/b1/W2 are streamed over the hidden axis when n_h > 1; single-buffer
        # them only when their index map is constant over the whole grid.
        w_kw = resident if n_h == 1 else {}
        in_specs = [
            pl.BlockSpec((tm, input_dim), lambda i, j: (i, 0)),        # x (f32)
            pl.BlockSpec((input_dim, th), lambda i, j: (0, j), **w_kw),  # W1^T cols
            pl.BlockSpec((1, th), lambda i, j: (0, j), **w_kw),          # b1 tile
            pl.BlockSpec((th, d_out), lambda i, j: (j, 0), **w_kw),      # W2^T rows
            pl.BlockSpec((1, d_out), lambda i, j: (0, 0), **resident),   # b2
        ]
        out_specs = pl.BlockSpec((tm, d_out), lambda i, j: (i, 0))
        # NOTE(megacore): with ("parallel", ...) each TensorCore DMAs its own
        # copy of the streamed weight tiles.  TODO(synk): for weight-DMA-bound
        # tiny-batch cases, shard d_out across cores instead.
        return pl.pallas_call(
            mlp_kernel,
            out_shape=jax.ShapeDtypeStruct((batch, d_out), out_dtype),
            grid=grid,
            in_specs=in_specs,
            out_specs=out_specs,
            scratch_shapes=[pltpu.VMEM((tm, d_out), jnp.float32)],
            compiler_params=pltpu.CompilerParams(
                dimension_semantics=("parallel", "arbitrary"),
                vmem_limit_bytes=vmem_limit),
            cost_estimate=cost,
        )(x, w1t, b1p, w2t, b2p)

    try:
        out_padded = run(use_buffered=True)
    except Exception:
        # pl.Buffered(1) / pipeline_mode unavailable or rejected on this jax
        # version: fall back to default double-buffering (identical results).
        out_padded = run(use_buffered=False)

    if d_out == output_dim:
        return out_padded
    return out_padded[:, :output_dim]


def mlp_forward(x, w1, b1, w2, b2, *, block_m=None, out_dtype=None):
    """Convenience wrapper (PyTorch nn.Linear layouts).  NOTE: re-runs the
    weight prep every call; for the hot path call prepare_params() once and
    mlp_forward_prepared() per step."""
    return mlp_forward_prepared(x, prepare_params(w1, b1, w2, b2),
                                block_m=block_m, out_dtype=out_dtype)


def init_params(key, input_dim, hidden_dim, output_dim, dtype=jnp.float32):
    # Deterministic init mimicking PyTorch nn.Linear default:
    # U(-1/sqrt(fan_in), 1/sqrt(fan_in)) for both weight and bias.
    k1, k2, k3, k4 = jax.random.split(key, 4)
    bound1 = 1.0 / jnp.sqrt(input_dim)
    bound2 = 1.0 / jnp.sqrt(hidden_dim)
    w1 = jax.random.uniform(k1, (hidden_dim, input_dim), dtype, -bound1, bound1)
    b1 = jax.random.uniform(k2, (hidden_dim,), dtype, -bound1, bound1)
    w2 = jax.random.uniform(k3, (output_dim, hidden_dim), dtype, -bound2, bound2)
    b2 = jax.random.uniform(k4, (output_dim,), dtype, -bound2, bound2)
    return w1, b1, w2, b2


if __name__ == "__main__":
    key = jax.random.PRNGKey(0)
    batch, input_dim, hidden_dim, output_dim = 8, 16, 32, 8

    kx, kp = jax.random.split(key)
    x = jax.random.normal(kx, (batch, input_dim), jnp.float32)
    w1, b1, w2, b2 = init_params(kp, input_dim, hidden_dim, output_dim)

    # Weight prep happens ONCE, outside the hot path.
    params = prepare_params(w1, b1, w2, b2)
    fwd = jax.jit(lambda xx: mlp_forward_prepared(xx, params))

    out = fwd(x)
    jax.block_until_ready(out)
    assert out.shape == (batch, output_dim)

    # Reference 1: same bf16 cast points as the kernel (tight tolerance).
    xb, w1b, w2b = (a.astype(jnp.bfloat16) for a in (x, w1, w2))
    h_ref = jnp.maximum(
        jnp.dot(xb, w1b.T, preferred_element_type=jnp.float32) + b1, 0.0)
    ref_bf16 = jnp.dot(h_ref.astype(jnp.bfloat16), w2b.T,
                       preferred_element_type=jnp.float32) + b2
    assert jnp.allclose(out, ref_bf16, atol=1e-3, rtol=1e-3)

    # Reference 2: full f32 (bf16 matmul rounding -> loose tolerance).
    ref_f32 = jnp.maximum(x @ w1.T + b1, 0.0) @ w2.T + b2
    assert jnp.allclose(out, ref_f32, atol=5e-2, rtol=5e-2)

    print("KERNEL_OK")
</pallas_src>

<mosaic_0001>
module attributes {stable_mosaic.version = 11 : i64} {
  func.func @mlp_kernel(%arg0: i32, %arg1: i32, %arg2: memref<8x16xf32, #tpu.memory_space<vmem>>, %arg3: memref<16x128xbf16, #tpu.memory_space<vmem>>, %arg4: memref<1x128xf32, #tpu.memory_space<vmem>>, %arg5: memref<128x128xbf16, #tpu.memory_space<vmem>>, %arg6: memref<1x128xf32, #tpu.memory_space<vmem>>, %arg7: memref<8x128xf32, #tpu.memory_space<vmem>>, %arg8: memref<8x128xf32, #tpu.memory_space<vmem>>) attributes {dimension_semantics = [#tpu.dimension_semantics<parallel>, #tpu.dimension_semantics<arbitrary>], iteration_bounds = array<i64: 1, 1>, scalar_prefetch = 0 : i64, scratch_operands = 1 : i64, tpu.core_type = #tpu.core_type<tc>, window_params = [{transform_indices = @transform_0, window_bounds = array<i64: 8, 16>}, {pipeline_mode = #tpu.pipeline_mode<synchronous>, transform_indices = @transform_1, window_bounds = array<i64: 16, 128>}, {pipeline_mode = #tpu.pipeline_mode<synchronous>, transform_indices = @transform_2, window_bounds = array<i64: 1, 128>}, {pipeline_mode = #tpu.pipeline_mode<synchronous>, transform_indices = @transform_3, window_bounds = array<i64: 128, 128>}, {pipeline_mode = #tpu.pipeline_mode<synchronous>, transform_indices = @transform_4, window_bounds = array<i64: 1, 128>}, {transform_indices = @transform_5, window_bounds = array<i64: 8, 128>}]} {
    %c0_i32 = arith.constant 0 : i32
    %0 = arith.cmpi eq, %arg1, %c0_i32 : i32
    %1 = arith.extui %0 : i1 to i32
    %c0_i32_0 = arith.constant 0 : i32
    %2 = arith.cmpi ne, %1, %c0_i32_0 : i32
    scf.if %2 {
      %cst_16 = arith.constant 0.000000e+00 : f32
      %21 = vector.broadcast %cst_16 : f32 to vector<8x128xf32>
      %c0_17 = arith.constant 0 : index
      %c0_18 = arith.constant 0 : index
      %22 = vector.load %arg8[%c0_17, %c0_18] : memref<8x128xf32, #tpu.memory_space<vmem>>, vector<8x128xf32>
      tpu.vector_store %arg8[%c0_17, %c0_18], %21 {strides = array<i32>} : memref<8x128xf32, #tpu.memory_space<vmem>>, vector<8x128xf32>,
    } else {
    }
    %c0 = arith.constant 0 : index
    %c0_1 = arith.constant 0 : index
    %3 = vector.load %arg2[%c0, %c0_1] : memref<8x16xf32, #tpu.memory_space<vmem>>, vector<8x16xf32>
    %4 = arith.truncf %3 : vector<8x16xf32> to vector<8x16xbf16>
    %c0_2 = arith.constant 0 : index
    %c0_3 = arith.constant 0 : index
    %5 = vector.load %arg3[%c0_2, %c0_3] : memref<16x128xbf16, #tpu.memory_space<vmem>>, vector<16x128xbf16>
    %cst = arith.constant dense<0.000000e+00> : vector<8x128xf32>
    %6 = tpu.matmul %4, %5, %cst {dimension_numbers = #tpu.dot_dimension_numbers<[1], [0], [0], [1], [0, 0, 1, 1], [], []>} : vector<8x16xbf16>, vector<16x128xbf16>, vector<8x128xf32> -> vector<8x128xf32>
    %c0_4 = arith.constant 0 : index
    %c0_5 = arith.constant 0 : index
    %7 = vector.load %arg4[%c0_4, %c0_5] : memref<1x128xf32, #tpu.memory_space<vmem>>, vector<1x128xf32>
    %8 = vector.broadcast %7 : vector<1x128xf32> to vector<8x128xf32>
    %9 = arith.addf %6, %8 : vector<8x128xf32>
    %cst_6 = arith.constant 0.000000e+00 : f32
    %10 = vector.broadcast %cst_6 : f32 to vector<8x128xf32>
    %11 = arith.maximumf %9, %10 : vector<8x128xf32>
    %c0_7 = arith.constant 0 : index
    %c0_8 = arith.constant 0 : index
    %12 = vector.load %arg8[%c0_7, %c0_8] : memref<8x128xf32, #tpu.memory_space<vmem>>, vector<8x128xf32>
    %13 = arith.truncf %11 : vector<8x128xf32> to vector<8x128xbf16>
    %c0_9 = arith.constant 0 : index
    %c0_10 = arith.constant 0 : index
    %14 = vector.load %arg5[%c0_9, %c0_10] : memref<128x128xbf16, #tpu.memory_space<vmem>>, vector<128x128xbf16>
    %cst_11 = arith.constant dense<0.000000e+00> : vector<8x128xf32>
    %15 = tpu.matmul %13, %14, %cst_11 {dimension_numbers = #tpu.dot_dimension_numbers<[1], [0], [0], [1], [0, 0, 1, 1], [], []>} : vector<8x128xbf16>, vector<128x128xbf16>, vector<8x128xf32> -> vector<8x128xf32>
    %16 = arith.addf %12, %15 : vector<8x128xf32>
    %c0_12 = arith.constant 0 : index
    %c0_13 = arith.constant 0 : index
    %17 = vector.load %arg8[%c0_12, %c0_13] : memref<8x128xf32, #tpu.memory_space<vmem>>, vector<8x128xf32>
    tpu.vector_store %arg8[%c0_12, %c0_13], %16 {strides = array<i32>} : memref<8x128xf32, #tpu.memory_space<vmem>>, vector<8x128xf32>,
    %c0_i32_14 = arith.constant 0 : i32
    %18 = arith.cmpi eq, %arg1, %c0_i32_14 : i32
    %19 = arith.extui %18 : i1 to i32
    %c0_i32_15 = arith.constant 0 : i32
    %20 = arith.cmpi ne, %19, %c0_i32_15 : i32
    scf.if %20 {
      %c0_16 = arith.constant 0 : index
      %c0_17 = arith.constant 0 : index
      %21 = vector.load %arg8[%c0_16, %c0_17] : memref<8x128xf32, #tpu.memory_space<vmem>>, vector<8x128xf32>
      %c0_18 = arith.constant 0 : index
      %c0_19 = arith.constant 0 : index
      %22 = vector.load %arg6[%c0_18, %c0_19] : memref<1x128xf32, #tpu.memory_space<vmem>>, vector<1x128xf32>
      %23 = vector.broadcast %22 : vector<1x128xf32> to vector<8x128xf32>
      %24 = arith.addf %21, %23 : vector<8x128xf32>
      %c0_20 = arith.constant 0 : index
      %c0_21 = arith.constant 0 : index
      %25 = vector.load %arg7[%c0_20, %c0_21] : memref<8x128xf32, #tpu.memory_space<vmem>>, vector<8x128xf32>
      tpu.vector_store %arg7[%c0_20, %c0_21], %24 {strides = array<i32>} : memref<8x128xf32, #tpu.memory_space<vmem>>, vector<8x128xf32>,
    } else {
    }
    return
  }
  func.func @transform_0(%arg0: i32, %arg1: i32) -> (i32, i32) {
    %c0_i32 = arith.constant 0 : i32
    %c0_i32_0 = arith.constant 0 : i32
    return %arg0, %c0_i32 : i32, i32
  }
  func.func @transform_1(%arg0: i32, %arg1: i32) -> (i32, i32) {
    %c0_i32 = arith.constant 0 : i32
    %c0_i32_0 = arith.constant 0 : i32
    return %c0_i32, %arg1 : i32, i32
  }
  func.func @transform_2(%arg0: i32, %arg1: i32) -> (i32, i32) {
    %c0_i32 = arith.constant 0 : i32
    %c0_i32_0 = arith.constant 0 : i32
    return %c0_i32, %arg1 : i32, i32
  }
  func.func @transform_3(%arg0: i32, %arg1: i32) -> (i32, i32) {
    %c0_i32 = arith.constant 0 : i32
    %c0_i32_0 = arith.constant 0 : i32
    return %arg1, %c0_i32 : i32, i32
  }
  func.func @transform_4(%arg0: i32, %arg1: i32) -> (i32, i32) {
    %c0_i32 = arith.constant 0 : i32
    %c0_i32_0 = arith.constant 0 : i32
    %c0_i32_1 = arith.constant 0 : i32
    return %c0_i32, %c0_i32_0 : i32, i32
  }
  func.func @transform_5(%arg0: i32, %arg1: i32) -> (i32, i32) {
    %c0_i32 = arith.constant 0 : i32
    %c0_i32_0 = arith.constant 0 : i32
    return %arg0, %c0_i32 : i32, i32
  }
}

</mosaic_0001>

<llo_original>
// kernel: _lambda_.1
$region0: #{_lambda_.1}
  #allocation0 [shape = 'u32[]', space=smem, size = 0x4, offset = 0x4, fixed_abs, tag = 'smem constant byte address 0x4 - core index']
  #allocation1 [shape = 'u32[144,128]{1,0:T(1,128)}', space=vmem, size = 0x12000, scoped, tag = 'internal scratch']
  #allocation2 [shape = 'f32[8,128]{1,0:T(8,128)}', space=vmem, size = 0x1000, scoped, tag = 'scratch operand']
  %s0 = inlined_call_operand.hbm [shape: f32[8,16], index: 0, kind: input, shape index: {}]
  %s1 = inlined_call_operand.vmem [shape: bf16[16,128], index: 1, kind: input, shape index: {}]
  %s2 = inlined_call_operand.vmem [shape: f32[1,128], index: 2, kind: input, shape index: {}]
  %s3 = inlined_call_operand.hbm [shape: bf16[128,128], index: 3, kind: input, shape index: {}]
  %s4 = inlined_call_operand.vmem [shape: f32[1,128], index: 4, kind: input, shape index: {}]
  %s5 = inlined_call_operand.hbm [shape: f32[8,128], index: 5, kind: output, shape index: {}]
  %s6 = sld [smem:[#allocation0]]
  $region46: #{_lambda_.1} parent=0
    _
  %s8 = ssub.s32 1, %s6
  %s9 = scalar_select 0, %s8, %s6
  $region1: #{_lambda_.1} parent=0
    #allocation3 [shape = 'u8[4096]{0}', space=vmem, size = 0x1000, scoped, tag = 'input window, operand 0, single buffered']
    #allocation4 [shape = 's32[1]{0}', space=sflag, size = 0x4, scoped, tag = 'scoped memory for _lambda_.1']
    #allocation5 [shape = 's32[1]{0}', space=sflag, size = 0x4, scoped, tag = 'scoped memory for _lambda_.1']
    #allocation6 [shape = 'u8[32768]{0}', space=vmem, size = 0x8000, scoped, tag = 'input window, operand 3, single buffered']
    #allocation7 [shape = 's32[1]{0}', space=sflag, size = 0x4, scoped, tag = 'scoped memory for _lambda_.1']
    #allocation8 [shape = 'u8[4096]{0}', space=vmem, size = 0x1000, scoped, tag = 'output window, operand 0, single buffered']
    %10 = vsyncpa [#allocation4], 0
    %11 = vsyncpa [#allocation7], 0
    %12 = vsyncpa [#allocation5], 0
    // Predicated region
    $region2: #{_lambda_.1} parent=1 // pred_check
      _
    $region3: #{_lambda_.1} parent=1 // pred_check_branch
      %14 = sbr.rel (0) target = $region5
    $region4: #{_lambda_.1} parent=1 // pred_region
      %s16 = ssub.s32 128, 128
      %17 = vsyncadd [#allocation4], %s16
      %s19 = sshll.u32 [#allocation3], 4
      %s20 = int_to_ptr.vmem [resolvable:$true] %s19
      %22 = dma.hbm_to_vmem [thread:$0]  %s0, 128, %s20, [#allocation4]
    $region5: #{_lambda_.1} parent=1 // pred_fallthru
      _
    // Predicated region
    $region6: #{_lambda_.1} parent=1 // pred_check
      _
    $region7: #{_lambda_.1} parent=1 // pred_check_branch
      %24 = sbr.rel (0) target = $region9
    $region8: #{_lambda_.1} parent=1 // pred_region
      _
    $region9: #{_lambda_.1} parent=1 // pred_fallthru
      _
    // Predicated region
    $region10: #{_lambda_.1} parent=1 // pred_check
      _
    $region11: #{_lambda_.1} parent=1 // pred_check_branch
      %26 = sbr.rel (0) target = $region13
    $region12: #{_lambda_.1} parent=1 // pred_region
      _
    $region13: #{_lambda_.1} parent=1 // pred_fallthru
      _
    // Predicated region
    $region14: #{_lambda_.1} parent=1 // pred_check
      _
    $region15: #{_lambda_.1} parent=1 // pred_check_branch
      %28 = sbr.rel (0) target = $region17
    $region16: #{_lambda_.1} parent=1 // pred_region
      %s30 = ssub.s32 1024, 1024
      %31 = vsyncadd [#allocation7], %s30
      %s32 = sshll.u32 [#allocation6], 4
      %s33 = int_to_ptr.vmem [resolvable:$true] %s32
      %38 = dma.hbm_to_vmem [thread:$0]  %s3, 1024, %s33, [#allocation7], 64, 64, 4
    $region17: #{_lambda_.1} parent=1 // pred_fallthru
      _
    // Predicated region
    $region18: #{_lambda_.1} parent=1 // pred_check
      _
    $region19: #{_lambda_.1} parent=1 // pred_check_branch
      %40 = sbr.rel (0) target = $region21
    $region20: #{_lambda_.1} parent=1 // pred_region
      _
    $region21: #{_lambda_.1} parent=1 // pred_fallthru
      _
    // Predicated region
    $region22: #{_lambda_.1} parent=1 // pred_check
      _
    $region23: #{_lambda_.1} parent=1 // pred_check_branch
      %42 = sbr.rel (0) target = $region25
    $region24: #{_lambda_.1} parent=1 // pred_region
      %43 = dma.done [#allocation4], 128
    $region25: #{_lambda_.1} parent=1 // pred_fallthru
      _
    // Predicated region
    $region26: #{_lambda_.1} parent=1 // pred_check
      _
    $region27: #{_lambda_.1} parent=1 // pred_check_branch
      %45 = sbr.rel (0) target = $region29
    $region28: #{_lambda_.1} parent=1 // pred_region
      %46 = dma.done [#allocation7], 1024
    $region29: #{_lambda_.1} parent=1 // pred_fallthru
      _
    %p48 = scmp.eq.s32.totalorder 0, 0
    // Predicated region
    $region30: #{_lambda_.1} parent=1 // pred_check
      %p49 = pneg %p48
    $region31: #{_lambda_.1} parent=1 // pred_check_branch
      %51 = sbr.rel (%p49) target = $region33
    $region32: #{_lambda_.1} parent=1 // pred_region
      %52 = vst [vmem:[#allocation2] sm:$0xff] 0.0
    $region33: #{_lambda_.1} parent=1 // pred_fallthru
      _
    %v53 = vld [vmem:[#allocation3] sm:$0xff]
    %v54 = vpack.c.bf16 %v53, %v53
    %v55 = vld [vmem:[%s1] sm:$0xf]
    %v56 = vld [vmem:[%s1 + $0x4] sm:$0xf]
    %v57 = vld [vmem:[%s2] sm:$0x1]
    %v59 = vlaneseq
    %v60 = vshrl.u32 %v59, 7
    %v61 = vsub.s32 0, %v60
    %v62 = vrot.slane %v57, %v61
    %v66 = vunpack.c.l.b16 %v55
    %v67 = vunpack.c.l.b16 %v56
    %v68 = vpack.c.b16 %v67, %v66
    %vm70 = vcmask 130048
    %v72 = vsel %vm70, %v54, 0
    %74 = vmatprep.subr.bf16.mxu0 0
    %75 = vmatpush1.bf16.msra.mxu0 %v68
    %76 = vmatprep.subr.bf16.mxu0 0
    %77 = vmatpush1.bf16.msra.mxu0 0
    %78 = vmatprep.subr.bf16.mxu0 0
    %79 = vmatpush1.bf16.msra.mxu0 0
    %80 = vmatprep.subr.bf16.mxu0 0
    %81 = vmatpush1.bf16.msra.mxu0 0
    %82 = vmatprep.subr.bf16.mxu0 0
    %83 = vmatpush1.bf16.msra.mxu0 0
    %84 = vmatprep.subr.bf16.mxu0 0
    %85 = vmatpush1.bf16.msra.mxu0 0
    %86 = vmatprep.subr.bf16.mxu0 0
    %87 = vmatpush1.bf16.msra.mxu0 0
    %88 = vmatprep.subr.bf16.mxu0 0
    %89 = vmatpush1.bf16.msra.mxu0 0
    %90 = vmatprep.subr.bf16.mxu0 0
    %91 = vmatpush1.bf16.msra.mxu0 0
    %92 = vmatprep.subr.bf16.mxu0 0
    %93 = vmatpush1.bf16.msra.mxu0 0
    %94 = vmatprep.subr.bf16.mxu0 0
    %95 = vmatpush1.bf16.msra.mxu0 0
    %96 = vmatprep.subr.bf16.mxu0 0
    %97 = vmatpush1.bf16.msra.mxu0 0
    %98 = vmatprep.subr.bf16.mxu0 0
    %99 = vmatpush1.bf16.msra.mxu0 0
    %100 = vmatprep.subr.bf16.mxu0 0
    %101 = vmatpush1.bf16.msra.mxu0 0
    %102 = vmatprep.subr.bf16.mxu0 0
    %103 = vmatpush1.bf16.msra.mxu0 0
    %104 = vmatprep.subr.bf16.mxu0 0
    %105 = vmatpush1.bf16.msra.mxu0 0
    %106 = vmatprep.mubr.bf16.mxu0 0
    %107 = vmatmul.mubr.bf16.gmra.mrb[0].mxu0 %v72
    %v108 = vpop.f32.mrb[0].mxu0
    %v109 = vadd.f32 %v62, %v108
    %v110 = vpop.f32.mrb[0].mxu0
    %v111 = vpop.f32.mrb[0].mxu0
    %v112 = vpop.f32.mrb[0].mxu0
    %113 = vdwg.mxu0
    %v114 = vmax.f32 %v109, 0.0
    %v115 = vld [vmem:[#allocation2] sm:$0xff]
    %v116 = vpack.c.bf16 %v114, %v114
    %v117 = vld [vmem:[#allocation6] sm:$0xf]
    %v118 = vld [vmem:[#allocation6 + $0x4] sm:$0xf]
    %v119 = vld [vmem:[#allocation6 + $0x8] sm:$0xf]
    %v120 = vld [vmem:[#allocation6 + $0xc] sm:$0xf]
    %v121 = vld [vmem:[#allocation6 + $0x10] sm:$0xf]
    %v122 = vld [vmem:[#allocation6 + $0x14] sm:$0xf]
    %v123 = vld [vmem:[#allocation6 + $0x18] sm:$0xf]
    %v124 = vld [vmem:[#allocation6 + $0x1c] sm:$0xf]
    %v125 = vld [vmem:[#allocation6 + $0x20] sm:$0xf]
    %v126 = vld [vmem:[#allocation6 + $0x24] sm:$0xf]
    %v127 = vld [vmem:[#allocation6 + $0x28] sm:$0xf]
    %v128 = vld [vmem:[#allocation6 + $0x2c] sm:$0xf]
    %v129 = vld [vmem:[#allocation6 + $0x30] sm:$0xf]
    %v130 = vld [vmem:[#allocation6 + $0x34] sm:$0xf]
    %v131 = vld [vmem:[#allocation6 + $0x38] sm:$0xf]
    %v132 = vld [vmem:[#allocation6 + $0x3c] sm:$0xf]
    %v149 = vunpack.c.l.b16 %v117
    %v150 = vunpack.c.l.b16 %v118
    %v151 = vunpack.c.l.b16 %v119
    %v152 = vunpack.c.l.b16 %v120
    %v153 = vunpack.c.l.b16 %v121
    %v154 = vunpack.c.l.b16 %v122
    %v155 = vunpack.c.l.b16 %v123
    %v156 = vunpack.c.l.b16 %v124
    %v157 = vunpack.c.l.b16 %v125
    %v158 = vunpack.c.l.b16 %v126
    %v159 = vunpack.c.l.b16 %v127
    %v160 = vunpack.c.l.b16 %v128
    %v161 = vunpack.c.l.b16 %v129
    %v162 = vunpack.c.l.b16 %v130
    %v163 = vunpack.c.l.b16 %v131
    %v164 = vunpack.c.l.b16 %v132
    %v165 = vpack.c.b16 %v150, %v149
    %v166 = vpack.c.b16 %v152, %v151
    %v167 = vpack.c.b16 %v154, %v153
    %v168 = vpack.c.b16 %v156, %v155
    %v169 = vpack.c.b16 %v158, %v157
    %v170 = vpack.c.b16 %v160, %v159
    %v171 = vpack.c.b16 %v162, %v161
    %v172 = vpack.c.b16 %v164, %v163
    %181 = vmatprep.subr.bf16.mxu0 0
    %182 = vmatpush1.bf16.msra.mxu0 %v165
    %183 = vmatprep.subr.bf16.mxu0 0
    %184 = vmatpush1.bf16.msra.mxu0 %v166
    %185 = vmatprep.subr.bf16.mxu0 0
    %186 = vmatpush1.bf16.msra.mxu0 %v167
    %187 = vmatprep.subr.bf16.mxu0 0
    %188 = vmatpush1.bf16.msra.mxu0 %v168
    %189 = vmatprep.subr.bf16.mxu0 0
    %190 = vmatpush1.bf16.msra.mxu0 %v169
    %191 = vmatprep.subr.bf16.mxu0 0
    %192 = vmatpush1.bf16.msra.mxu0 %v170
    %193 = vmatprep.subr.bf16.mxu0 0
    %194 = vmatpush1.bf16.msra.mxu0 %v171
    %195 = vmatprep.subr.bf16.mxu0 0
    %196 = vmatpush1.bf16.msra.mxu0 %v172
    %197 = vmatprep.subr.bf16.mxu0 0
    %198 = vmatpush1.bf16.msra.mxu0 0
    %199 = vmatprep.subr.bf16.mxu0 0
    %200 = vmatpush1.bf16.msra.mxu0 0
    %201 = vmatprep.subr.bf16.mxu0 0
    %202 = vmatpush1.bf16.msra.mxu0 0
    %203 = vmatprep.subr.bf16.mxu0 0
    %204 = vmatpush1.bf16.msra.mxu0 0
    %205 = vmatprep.subr.bf16.mxu0 0
    %206 = vmatpush1.bf16.msra.mxu0 0
    %207 = vmatprep.subr.bf16.mxu0 0
    %208 = vmatpush1.bf16.msra.mxu0 0
    %209 = vmatprep.subr.bf16.mxu0 0
    %210 = vmatpush1.bf16.msra.mxu0 0
    %211 = vmatprep.subr.bf16.mxu0 0
    %212 = vmatpush1.bf16.msra.mxu0 0
    %213 = vmatprep.mubr.bf16.mxu0 0
    %214 = vmatmul.mubr.bf16.gmra.mrb[0].mxu0 %v116
    %v215 = vpop.f32.mrb[0].mxu0
    %v216 = vadd.f32 0.0, %v215
    %v217 = vpop.f32.mrb[0].mxu0
    %v218 = vpop.f32.mrb[0].mxu0
    %v219 = vpop.f32.mrb[0].mxu0
    %220 = vdwg.mxu0
    %v221 = vadd.f32 %v115, %v216
    %222 = vst [vmem:[#allocation2] sm:$0xff] %v221
    // Predicated region
    $region34: #{_lambda_.1} parent=1 // pred_check
      %p223 = pneg %p48
    $region35: #{_lambda_.1} parent=1 // pred_check_branch
      %225 = sbr.rel (%p223) target = $region37
    $region36: #{_lambda_.1} parent=1 // pred_region
      %v226 = vld [vmem:[#allocation2] sm:$0xff]
      %v227 = vld [vmem:[%s4] sm:$0x1]
      %v229 = vlaneseq
      %v230 = vshrl.u32 %v229, 7
      %v231 = vsub.s32 0, %v230
      %v232 = vrot.slane %v227, %v231
      %v234 = vadd.f32 %v226, %v232
      %235 = vst [vmem:[#allocation8] sm:$0xff] %v234
    $region37: #{_lambda_.1} parent=1 // pred_fallthru
      _
    // Predicated region
    $region38: #{_lambda_.1} parent=1 // pred_check
      _
    $region39: #{_lambda_.1} parent=1 // pred_check_branch
      %237 = sbr.rel (0) target = $region41
    $region40: #{_lambda_.1} parent=1 // pred_region
      %s239 = ssub.s32 128, 128
      %240 = vsyncadd [#allocation5], %s239
      %s242 = sshll.u32 [#allocation8], 4
      %s243 = int_to_ptr.vmem [resolvable:$true] %s242
      %245 = dma.vmem_to_hbm [thread:$0]  %s243, 128, %s5, [#allocation5]
    $region41: #{_lambda_.1} parent=1 // pred_fallthru
      _
    // Predicated region
    $region42: #{_lambda_.1} parent=1 // pred_check
      _
    $region43: #{_lambda_.1} parent=1 // pred_check_branch
      %247 = sbr.rel (0) target = $region45
    $region44: #{_lambda_.1} parent=1 // pred_region
      %248 = dma.done [#allocation5], 128
    $region45: #{_lambda_.1} parent=1 // pred_fallthru
      _
    %249 = vsyncpa [#allocation4], 1
    %250 = vsyncpa [#allocation7], 1
    %251 = vsyncpa [#allocation5], 1

</llo_original>
